<compile_context>
chip_gen: v6e
topology: v6e:2x2x1
jax: 0.10.0
libtpu: 0.0.40
codegen_flags: <defaults>
</compile_context>

<pallas_src>
import functools

import jax
import jax.numpy as jnp
from jax.experimental import pallas as pl
from jax.experimental.pallas import tpu as pltpu

LANE = 128                     # TPU lane width (last dim)
_SUBLANE_F32 = 8
_SUBLANE_16BIT = 16
_SCRATCH_HEADROOM = 2 * 1024 * 1024   # slack for Mosaic-internal scratch


def _round_up(x, m):
    return ((x + m - 1) // m) * m


def _leaky_relu(x, slope=0.01):
    # torch.nn.LeakyReLU default negative_slope = 0.01
    return jnp.where(x > 0, x, slope * x)


def generator_kernel(z_ref, w1_ref, b1_ref, w2_ref, b2_ref, out_ref):
    # In-kernel cast to the compute dtype (avoids a wrapper-side pass over z
    # when compute dtype differs from z's HBM dtype).  No-op when equal.
    x = z_ref[...].astype(w1_ref.dtype)
    # Layer 1: MXU matmul with f32 accumulation; bias + LeakyReLU in f32.
    h = jnp.dot(x, w1_ref[...], preferred_element_type=jnp.float32)
    h = _leaky_relu(h + b1_ref[...])
    # Layer 2: feed the MXU in the compute dtype (bf16 on v6e/v7x), f32 acc.
    h = h.astype(w2_ref.dtype)
    o = jnp.dot(h, w2_ref[...], preferred_element_type=jnp.float32)
    o = _leaky_relu(o + b2_ref[...])
    out_ref[...] = o.astype(out_ref.dtype)


@functools.lru_cache(maxsize=None)
def _tpu_vmem_and_cores():
    """Returns (per-core VMEM bytes, TensorCores per chip), conservatively."""
    try:
        info = pltpu.get_tpu_info()
        cap = int(info.vmem_capacity_bytes)
        cores = next((int(getattr(info, a)) for a in
                      ("num_tensorcores", "tensorcore_count", "num_cores",
                       "cores_per_chip") if getattr(info, a, None)), 0)
        if not cores:
            # Among v5e / v6e / v7x, only v7x has 2 TCs/chip, and it is also
            # the only one with 64 MiB (vs 128 MiB) VMEM per TensorCore.
            cores = 2 if cap <= 80 * 1024 * 1024 else 1
        return cap, cores
    except Exception:
        return 64 * 1024 * 1024, 1   # safe everywhere


def _probe_kernel(a_ref, o_ref):
    o_ref[...] = a_ref[...]


@functools.lru_cache(maxsize=None)
def _single_buffered_weights_supported():
    """One-time capability probe: can a grid-invariant input block be held in
    a single VMEM buffer via pipeline_mode=pl.Buffered(1)?  (Static choice for
    the real kernel; no try/except around the real pallas_call.)"""
    try:
        x = jnp.zeros((8, LANE), jnp.float32)
        fn = pl.pallas_call(
            _probe_kernel,
            out_shape=jax.ShapeDtypeStruct((16, LANE), jnp.float32),
            grid_spec=pltpu.PrefetchScalarGridSpec(
                num_scalar_prefetch=0,
                grid=(2,),
                in_specs=[pl.BlockSpec((8, LANE), lambda i: (0, 0),
                                       pipeline_mode=pl.Buffered(1))],
                out_specs=pl.BlockSpec((8, LANE), lambda i: (i, 0)),
            ),
        )
        jax.block_until_ready(fn(x))
        return True
    except Exception:
        return False


def generator_forward(z, w1, b1, w2, b2, *, tile_b=None, compute_dtype=None,
                      vmem_budget_bytes=None):
    """Fused 2-layer MLP: LeakyReLU(LeakyReLU(z @ w1 + b1) @ w2 + b2).

    z  : [B, input_dim]                       (streamed as-is, never copied)
    w1 : [input_dim, latent_dim],  b1 : [latent_dim]
    w2 : [latent_dim, output_dim], b2 : [output_dim]
    Returns [B, output_dim] in z.dtype.
    """
    B, input_dim = z.shape
    latent_dim = w1.shape[1]
    output_dim = w2.shape[1]
    out_dtype = z.dtype

    compute_dtype = jnp.dtype(z.dtype if compute_dtype is None else compute_dtype)
    c_size = compute_dtype.itemsize
    z_size = jnp.dtype(z.dtype).itemsize
    o_size = jnp.dtype(out_dtype).itemsize
    # Sublane granularity for the HBM-facing batch tiles (z / out dtypes).
    sub = _SUBLANE_16BIT if min(z_size, o_size) < 4 else _SUBLANE_F32

    # Only the internal latent lane dim is padded to 128 so h and both MXU
    # operands are lane-dense; z / output / output_dim stay unpadded (their
    # block last dim equals the full array dim, which Mosaic accepts).
    lat_p = _round_up(latent_dim, LANE)

    cap, cores = _tpu_vmem_and_cores()
    single_buffer_weights = _single_buffered_weights_supported()
    if vmem_budget_bytes is None:
        # Generation-aware planning budget: half of physical per-core VMEM
        # (64 MiB on v5e/v6e, 32 MiB on v7x).
        vmem_budget_bytes = cap // 2

    weight_bufs = 1 if single_buffer_weights else 2
    weight_bytes = weight_bufs * (
        (input_dim * lat_p + lat_p * output_dim) * c_size
        + (lat_p + output_dim) * 4)
    # Per-batch-row VMEM: double-buffered z/out tiles + f32 intermediates
    # (+ casted copies when the compute dtype differs from the HBM dtypes).
    row_bytes = (2 * input_dim * z_size
                 + 2 * output_dim * o_size
                 + (lat_p + _round_up(output_dim, LANE)) * 4
                 + (input_dim + lat_p) * c_size)

    if tile_b is None:
        avail = vmem_budget_bytes - weight_bytes - _SCRATCH_HEADROOM
        if avail < sub * row_bytes:
            # Widen toward physical capacity before giving up on a
            # resident-weight plan.
            # TODO(synk): very wide layers need an N/K-tiled weight path
            # (extra grid axis over latent/output chunks with an f32 VMEM
            # accumulator and "arbitrary" semantics) instead of clamping.
            vmem_budget_bytes = min(int(0.9 * cap),
                                    weight_bytes + sub * row_bytes
                                    + _SCRATCH_HEADROOM)
            avail = vmem_budget_bytes - weight_bytes - _SCRATCH_HEADROOM
        row_cap = 2048 if cap > 96 * 1024 * 1024 else 1024
        tile_cap = max(sub, min(row_cap, (avail // row_bytes) // sub * sub))
        # Pick the number of grid steps first, then balance the tile so the
        # ragged last block wastes < `sub` rows.  Force >=2 steps only on
        # megacore (2-TC) chips; on single-TC v5e/v6e extra steps are pure
        # pipeline overhead.
        grid_b = pl.cdiv(B, tile_cap)
        if cores > 1 and B > sub:
            grid_b = max(grid_b, cores)
        tile_b = int(min(tile_cap, _round_up(pl.cdiv(B, grid_b), sub)))
    assert tile_b % sub == 0, (
        f"tile_b must be a multiple of {sub} for dtypes ({z.dtype}, {out_dtype})")
    grid_b = pl.cdiv(B, tile_b)

    # Explicit scoped-VMEM limit derived from the actual plan (+ headroom).
    vmem_limit = int(min(0.92 * cap,
                         weight_bytes + tile_b * row_bytes
                         + 2 * _SCRATCH_HEADROOM))
    vmem_limit = max(vmem_limit, 16 * 1024 * 1024)

    def pad2(x, r, c):
        pr, pc = r - x.shape[0], c - x.shape[1]
        return x if (pr == 0 and pc == 0) else jnp.pad(x, ((0, pr), (0, pc)))

    # Only the (small) parameters are padded / cast in the wrapper; this is a
    # one-time cost and constant-folds under jit.  Zero padding leaves the
    # result unchanged (padded h lanes are LeakyReLU(0)=0 and hit zero rows
    # of the padded w2).
    w1_p = pad2(w1.astype(compute_dtype), input_dim, lat_p)
    w2_p = pad2(w2.astype(compute_dtype), lat_p, output_dim)
    # Biases stay f32: the epilogue (bias add + LeakyReLU) runs in f32.
    b1_p = pad2(b1.reshape(1, latent_dim).astype(jnp.float32), 1, lat_p)
    b2_p = b2.reshape(1, output_dim).astype(jnp.float32)

    cost = pl.CostEstimate(
        flops=2 * B * (input_dim * lat_p + lat_p * output_dim),
        transcendentals=0,
        bytes_accessed=int(B * input_dim * z_size
                           + (input_dim * lat_p + lat_p * output_dim) * c_size
                           + (lat_p + output_dim) * 4
                           + B * output_dim * o_size),
    )

    resident = pl.Buffered(1) if single_buffer_weights else None

    def _const_spec(shape):
        # Grid-invariant block: constant index_map -> fetched once; single
        # VMEM buffer when the capability probe says Buffered(1) is available.
        if resident is None:
            return pl.BlockSpec(shape, lambda i: (0, 0))
        return pl.BlockSpec(shape, lambda i: (0, 0), pipeline_mode=resident)

    grid_spec = pltpu.PrefetchScalarGridSpec(
        num_scalar_prefetch=0,
        grid=(grid_b,),
        in_specs=[
            # batch tile of z changes per grid step (unpadded K / lane dim)
            pl.BlockSpec((tile_b, input_dim), lambda i: (i, 0)),
            _const_spec((input_dim, lat_p)),   # w1
            _const_spec((1, lat_p)),           # b1
            _const_spec((lat_p, output_dim)),  # w2
            _const_spec((1, output_dim)),      # b2
        ],
        out_specs=pl.BlockSpec((tile_b, output_dim), lambda i: (i, 0)),
    )

    out = pl.pallas_call(
        generator_kernel,
        out_shape=jax.ShapeDtypeStruct((B, output_dim), out_dtype),
        grid_spec=grid_spec,
        compiler_params=pltpu.CompilerParams(
            dimension_semantics=("parallel",),
            vmem_limit_bytes=vmem_limit),
        cost_estimate=cost,
    )(z, w1_p, b1_p, w2_p, b2_p)
    return out


def _ref_forward(z, w1, b1, w2, b2):
    h = z @ w1 + b1
    h = jnp.where(h > 0, h, 0.01 * h)
    o = h @ w2 + b2
    return jnp.where(o > 0, o, 0.01 * o)


if __name__ == "__main__":
    # NOTE: at truly tiny shapes a plain XLA dot chain beats any Pallas kernel;
    # these demo shapes are kept small but exercise the padding + tiling paths.
    batch, input_dim, latent_dim, output_dim = 64, 48, 96, 40

    key = jax.random.PRNGKey(0)
    kz, kw1, kb1, kw2, kb2 = jax.random.split(key, 5)

    z = jax.random.normal(kz, (batch, input_dim), dtype=jnp.float32)

    # Deterministic parameter init (Kaiming-uniform-ish bounds like torch Linear).
    bound1 = 1.0 / (input_dim ** 0.5)
    bound2 = 1.0 / (latent_dim ** 0.5)
    w1 = jax.random.uniform(kw1, (input_dim, latent_dim), jnp.float32, -bound1, bound1)
    b1 = jax.random.uniform(kb1, (latent_dim,), jnp.float32, -bound1, bound1)
    w2 = jax.random.uniform(kw2, (latent_dim, output_dim), jnp.float32, -bound2, bound2)
    b2 = jax.random.uniform(kb2, (output_dim,), jnp.float32, -bound2, bound2)

    ref = _ref_forward(z, w1, b1, w2, b2)

    # f32 path (default: matches the PyTorch module's numerics).
    out_f32 = jax.block_until_ready(generator_forward(z, w1, b1, w2, b2))
    assert out_f32.shape == (batch, output_dim)
    assert jnp.allclose(out_f32, ref, atol=1e-4, rtol=1e-4), "f32 mismatch vs reference"

    # bf16-operand path (MXU peak on v6e/v7x; f32 accumulation + f32 epilogue;
    # the cast happens inside the kernel, z streams from HBM untouched).
    out_bf16 = jax.block_until_ready(
        generator_forward(z, w1, b1, w2, b2, compute_dtype=jnp.bfloat16))
    assert out_bf16.shape == (batch, output_dim)
    assert jnp.allclose(out_bf16, ref, atol=1e-1, rtol=1e-1), "bf16 mismatch vs reference"

    print("KERNEL_OK")
</pallas_src>

<mosaic_0001>
module attributes {stable_mosaic.version = 11 : i64} {
  func.func @_probe_kernel(%arg0: i32, %arg1: memref<8x128xf32, #tpu.memory_space<vmem>>, %arg2: memref<8x128xf32, #tpu.memory_space<vmem>>) attributes {dimension_semantics = [#tpu.dimension_semantics<arbitrary>], iteration_bounds = array<i64: 2>, scalar_prefetch = 0 : i64, scratch_operands = 0 : i64, tpu.core_type = #tpu.core_type<tc>, window_params = [{pipeline_mode = #tpu.pipeline_mode<synchronous>, transform_indices = @transform_0, window_bounds = array<i64: 8, 128>}, {transform_indices = @transform_1, window_bounds = array<i64: 8, 128>}]} {
    %c0 = arith.constant 0 : index
    %c0_0 = arith.constant 0 : index
    %0 = vector.load %arg1[%c0, %c0_0] : memref<8x128xf32, #tpu.memory_space<vmem>>, vector<8x128xf32>
    %c0_1 = arith.constant 0 : index
    %c0_2 = arith.constant 0 : index
    %1 = vector.load %arg2[%c0_1, %c0_2] : memref<8x128xf32, #tpu.memory_space<vmem>>, vector<8x128xf32>
    tpu.vector_store %arg2[%c0_1, %c0_2], %0 {strides = array<i32>} : memref<8x128xf32, #tpu.memory_space<vmem>>, vector<8x128xf32>,
    return
  }
  func.func @transform_0(%arg0: i32) -> (i32, i32) {
    %c0_i32 = arith.constant 0 : i32
    %c0_i32_0 = arith.constant 0 : i32
    %c0_i32_1 = arith.constant 0 : i32
    return %c0_i32, %c0_i32_0 : i32, i32
  }
  func.func @transform_1(%arg0: i32) -> (i32, i32) {
    %c0_i32 = arith.constant 0 : i32
    %c0_i32_0 = arith.constant 0 : i32
    return %arg0, %c0_i32 : i32, i32
  }
}

module attributes {stable_mosaic.version = 11 : i64} {
  func.func @generator_kernel(%arg0: i32, %arg1: memref<64x48xf32, #tpu.memory_space<vmem>>, %arg2: memref<48x128xf32, #tpu.memory_space<vmem>>, %arg3: memref<1x128xf32, #tpu.memory_space<vmem>>, %arg4: memref<128x40xf32, #tpu.memory_space<vmem>>, %arg5: memref<1x40xf32, #tpu.memory_space<vmem>>, %arg6: memref<64x40xf32, #tpu.memory_space<vmem>>) attributes {dimension_semantics = [#tpu.dimension_semantics<parallel>], iteration_bounds = array<i64: 1>, scalar_prefetch = 0 : i64, scratch_operands = 0 : i64, tpu.core_type = #tpu.core_type<tc>, window_params = [{transform_indices = @transform_0, window_bounds = array<i64: 64, 48>}, {pipeline_mode = #tpu.pipeline_mode<synchronous>, transform_indices = @transform_1, window_bounds = array<i64: 48, 128>}, {pipeline_mode = #tpu.pipeline_mode<synchronous>, transform_indices = @transform_2, window_bounds = array<i64: 1, 128>}, {pipeline_mode = #tpu.pipeline_mode<synchronous>, transform_indices = @transform_3, window_bounds = array<i64: 128, 40>}, {pipeline_mode = #tpu.pipeline_mode<synchronous>, transform_indices = @transform_4, window_bounds = array<i64: 1, 40>}, {transform_indices = @transform_5, window_bounds = array<i64: 64, 40>}]} {
    %c0 = arith.constant 0 : index
    %c0_0 = arith.constant 0 : index
    %0 = vector.load %arg1[%c0, %c0_0] : memref<64x48xf32, #tpu.memory_space<vmem>>, vector<64x48xf32>
    %c0_1 = arith.constant 0 : index
    %c0_2 = arith.constant 0 : index
    %1 = vector.load %arg2[%c0_1, %c0_2] : memref<48x128xf32, #tpu.memory_space<vmem>>, vector<48x128xf32>
    %cst = arith.constant dense<0.000000e+00> : vector<64x128xf32>
    %2 = tpu.matmul %0, %1, %cst {dimension_numbers = #tpu.dot_dimension_numbers<[1], [0], [0], [1], [0, 0, 1, 1], [], []>} : vector<64x48xf32>, vector<48x128xf32>, vector<64x128xf32> -> vector<64x128xf32>
    %c0_3 = arith.constant 0 : index
    %c0_4 = arith.constant 0 : index
    %3 = vector.load %arg3[%c0_3, %c0_4] : memref<1x128xf32, #tpu.memory_space<vmem>>, vector<1x128xf32>
    %4 = vector.broadcast %3 : vector<1x128xf32> to vector<64x128xf32>
    %5 = arith.addf %2, %4 : vector<64x128xf32>
    %cst_5 = arith.constant 0.000000e+00 : f32
    %6 = vector.broadcast %cst_5 : f32 to vector<64x128xf32>
    %7 = arith.cmpf ogt, %5, %6 : vector<64x128xf32>
    %cst_6 = arith.constant 0.00999999977 : f32
    %8 = vector.broadcast %cst_6 : f32 to vector<64x128xf32>
    %9 = arith.mulf %8, %5 : vector<64x128xf32>
    %10 = arith.select %7, %5, %9 : vector<64x128xi1>, vector<64x128xf32>
    %c0_7 = arith.constant 0 : index
    %c0_8 = arith.constant 0 : index
    %11 = vector.load %arg4[%c0_7, %c0_8] : memref<128x40xf32, #tpu.memory_space<vmem>>, vector<128x40xf32>
    %cst_9 = arith.constant dense<0.000000e+00> : vector<64x40xf32>
    %12 = tpu.matmul %10, %11, %cst_9 {dimension_numbers = #tpu.dot_dimension_numbers<[1], [0], [0], [1], [0, 0, 1, 1], [], []>} : vector<64x128xf32>, vector<128x40xf32>, vector<64x40xf32> -> vector<64x40xf32>
    %c0_10 = arith.constant 0 : index
    %c0_11 = arith.constant 0 : index
    %13 = vector.load %arg5[%c0_10, %c0_11] : memref<1x40xf32, #tpu.memory_space<vmem>>, vector<1x40xf32>
    %14 = vector.broadcast %13 : vector<1x40xf32> to vector<64x40xf32>
    %15 = arith.addf %12, %14 : vector<64x40xf32>
    %cst_12 = arith.constant 0.000000e+00 : f32
    %16 = vector.broadcast %cst_12 : f32 to vector<64x40xf32>
    %17 = arith.cmpf ogt, %15, %16 : vector<64x40xf32>
    %cst_13 = arith.constant 0.00999999977 : f32
    %18 = vector.broadcast %cst_13 : f32 to vector<64x40xf32>
    %19 = arith.mulf %18, %15 : vector<64x40xf32>
    %20 = arith.select %17, %15, %19 : vector<64x40xi1>, vector<64x40xf32>
    %c0_14 = arith.constant 0 : index
    %c0_15 = arith.constant 0 : index
    %21 = vector.load %arg6[%c0_14, %c0_15] : memref<64x40xf32, #tpu.memory_space<vmem>>, vector<64x40xf32>
    tpu.vector_store %arg6[%c0_14, %c0_15], %20 {strides = array<i32>} : memref<64x40xf32, #tpu.memory_space<vmem>>, vector<64x40xf32>,
    return
  }
  func.func @transform_0(%arg0: i32) -> (i32, i32) {
    %c0_i32 = arith.constant 0 : i32
    %c0_i32_0 = arith.constant 0 : i32
    return %arg0, %c0_i32 : i32, i32
  }
  func.func @transform_1(%arg0: i32) -> (i32, i32) {
    %c0_i32 = arith.constant 0 : i32
    %c0_i32_0 = arith.constant 0 : i32
    %c0_i32_1 = arith.constant 0 : i32
    return %c0_i32, %c0_i32_0 : i32, i32
  }
  func.func @transform_2(%arg0: i32) -> (i32, i32) {
    %c0_i32 = arith.constant 0 : i32
    %c0_i32_0 = arith.constant 0 : i32
    %c0_i32_1 = arith.constant 0 : i32
    return %c0_i32, %c0_i32_0 : i32, i32
  }
  func.func @transform_3(%arg0: i32) -> (i32, i32) {
    %c0_i32 = arith.constant 0 : i32
    %c0_i32_0 = arith.constant 0 : i32
    %c0_i32_1 = arith.constant 0 : i32
    return %c0_i32, %c0_i32_0 : i32, i32
  }
  func.func @transform_4(%arg0: i32) -> (i32, i32) {
    %c0_i32 = arith.constant 0 : i32
    %c0_i32_0 = arith.constant 0 : i32
    %c0_i32_1 = arith.constant 0 : i32
    return %c0_i32, %c0_i32_0 : i32, i32
  }
  func.func @transform_5(%arg0: i32) -> (i32, i32) {
    %c0_i32 = arith.constant 0 : i32
    %c0_i32_0 = arith.constant 0 : i32
    return %arg0, %c0_i32 : i32, i32
  }
}

</mosaic_0001>

<llo_original>
// kernel: tpu_custom_call.1
$region0: #{tpu_custom_call.1}
  #allocation0 [shape = 'u32[]', space=smem, size = 0x4, offset = 0x4, fixed_abs, tag = 'smem constant byte address 0x4 - core index']
  #allocation1 [shape = 'u32[144,128]{1,0:T(1,128)}', space=vmem, size = 0x12000, scoped, tag = 'internal scratch']
  %s0 = inlined_call_operand.hbm [shape: f32[8,128], index: 0, kind: input, shape index: {}]
  %s1 = inlined_call_operand.hbm [shape: f32[16,128], index: 1, kind: output, shape index: {}]
  %s2 = sld [smem:[#allocation0]]
  $region41: #{tpu_custom_call.1} parent=0
    _
  %s4 = ssub.s32 1, %s2
  %s5 = scalar_select 0, %s4, %s2
  $region1: #{tpu_custom_call.1} parent=0
    #allocation2 [shape = 'u8[4096]{0}', space=vmem, size = 0x1000, scoped, tag = 'input window, operand 0, single buffered']
    #allocation3 [shape = 's32[2]{0}', space=sflag, size = 0x8, scoped, tag = 'scoped memory for tpu_custom_call.1']
    #allocation4 [shape = 's32[2]{0}', space=sflag, size = 0x8, scoped, tag = 'scoped memory for tpu_custom_call.1']
    #allocation5 [shape = 'u8[8192]{0}', space=vmem, size = 0x2000, scoped, tag = 'output window, operand 0']
    %6 = vsyncpa [#allocation3], 0
    %7 = vsyncpa [#allocation4], 0
    %s8 = scalar_lea.sflag [#allocation4], 1
    %9 = vsyncpa %s8, 0
    loop: start=0, step=1, limit=4
    $region2: #{tpu_custom_call.1} parent=1 // loop_pre_header
      _
    $region3: #{tpu_custom_call.1} parent=1 // loop_header
      %s11 = sphi 0, %s15
      %p12 = scmp.ge.s32.totalorder %s11, 4
      %s19 = sphi 0, %s19
      %s21 = sphi 0, %s19
      %s22 = sphi 0, %s21
      %s36 = sphi 0, %s22
      %s42 = sphi 0, %s44
      %s45 = sphi 0, %s42
      %s46 = sphi 0, %s45
      %s62 = sphi 0, %s46
    $region4: #{tpu_custom_call.1} parent=1 // loop_header_branch
      %14 = sbr.rel (%p12) target = $region8
    $region5: #{tpu_custom_call.1} parent=1 // loop_body
      %s16 = ssub.s32 %s11, 1
      %s17 = ssub.s32 %s11, 2
      %s18 = sadd.s32 %s11, 1
      %s20 = sadd.s32 %s19, 1
      %p23 = scmp.eq.s32.totalorder %s11, 1
      %p24 = scmp.ne.s32.totalorder %s19, %s21
      %p25 = scmp.eq.s32.totalorder %s11, 0
      %p26 = por %p24, %p25
      %p27 = scmp.ne.s32.totalorder %s19, %s21
      %p28 = scmp.eq.s32.totalorder %s16, 1
      %p29 = por %p27, %p28
      %p30 = scmp.ne.s32.totalorder %s21, %s22
      %p31 = scmp.eq.s32.totalorder %s16, 0
      %p32 = por %p30, %p31
      %p33 = scmp.ne.s32.totalorder %s21, %s22
      %p34 = scmp.eq.s32.totalorder %s17, 1
      %p35 = por %p33, %p34
      %p37 = scmp.ne.s32.totalorder %s22, %s36
      %p38 = scmp.eq.s32.totalorder %s17, 0
      %p39 = por %p37, %p38
      %s40 = ssub.s32 %s11, %s18
      %p41 = scmp.eq.s32.totalorder %s40, 0
      %s43 = sadd.s32 %s42, 1
      %s44 = scalar_select %p41, %s42, %s43
      %p47 = pneg %p41
      %p48 = scmp.eq.s32.totalorder %s11, 1
      %p49 = por %p47, %p48
      %p50 = scmp.ne.s32.totalorder %s42, %s45
      %p51 = scmp.eq.s32.totalorder %s11, 0
      %p52 = por %p50, %p51
      %p53 = scmp.ne.s32.totalorder %s42, %s45
      %p54 = scmp.eq.s32.totalorder %s16, 1
      %p55 = por %p53, %p54
      %p56 = scmp.ne.s32.totalorder %s45, %s46
      %p57 = scmp.eq.s32.totalorder %s16, 0
      %p58 = por %p56, %p57
      %p59 = scmp.ne.s32.totalorder %s45, %s46
      %p60 = scmp.eq.s32.totalorder %s17, 1
      %p61 = por %p59, %p60
      %p63 = scmp.ne.s32.totalorder %s46, %s62
      %p64 = scmp.eq.s32.totalorder %s17, 0
      %p65 = por %p63, %p64
      %p66 = scmp.le.s32.totalorder 1, %s11
      %p67 = scmp.lt.s32.totalorder %s11, 3
      %p68 = pnand %p66, %p67
      %p69 = pneg %p68
      // Predicated region
      $region9: #{tpu_custom_call.1} parent=5 // pred_check
        _
      $region10: #{tpu_custom_call.1} parent=5 // pred_check_branch
        %71 = sbr.rel (%p68) target = $region12
      $region11: #{tpu_custom_call.1} parent=5 // pred_region
        %s72 = ssub.s32 %s11, 1
        // Predicated region
        $region13: #{tpu_custom_call.1} parent=11 // pred_check
          %p73 = pneg %p32
        $region14: #{tpu_custom_call.1} parent=11 // pred_check_branch
          %75 = sbr.rel (%p73) target = $region16
        $region15: #{tpu_custom_call.1} parent=11 // pred_region
          %s77 = ssub.s32 128, 128
          %78 = vsyncadd [#allocation3], %s77
          %s80 = sshll.u32 [#allocation2], 4
          %s81 = int_to_ptr.vmem [resolvable:$true] %s80
          %83 = dma.hbm_to_vmem [thread:$0]  %s0, 128, %s81, [#allocation3]
        $region16: #{tpu_custom_call.1} parent=11 // pred_fallthru
          _
      $region12: #{tpu_custom_call.1} parent=5 // pred_fallthru
        _
      %p84 = scmp.lt.s32.totalorder %s11, 2
      // Predicated region
      $region17: #{tpu_custom_call.1} parent=5 // pred_check
        %p85 = pneg %p84
      $region18: #{tpu_custom_call.1} parent=5 // pred_check_branch
        %87 = sbr.rel (%p85) target = $region20
      $region19: #{tpu_custom_call.1} parent=5 // pred_region
        _
      $region20: #{tpu_custom_call.1} parent=5 // pred_fallthru
        _
      %p88 = scmp.le.s32.totalorder 1, %s11
      %p89 = scmp.lt.s32.totalorder %s11, 3
      %p90 = pnand %p88, %p89
      %p91 = pneg %p90
      // Predicated region
      $region21: #{tpu_custom_call.1} parent=5 // pred_check
        _
      $region22: #{tpu_custom_call.1} parent=5 // pred_check_branch
        %93 = sbr.rel (%p90) target = $region24
      $region23: #{tpu_custom_call.1} parent=5 // pred_region
        %s94 = ssub.s32 %s11, 1
        // Predicated region
        $region25: #{tpu_custom_call.1} parent=23 // pred_check
          %p95 = pneg %p32
        $region26: #{tpu_custom_call.1} parent=23 // pred_check_branch
          %97 = sbr.rel (%p95) target = $region28
        $region27: #{tpu_custom_call.1} parent=23 // pred_region
          %98 = dma.done [#allocation3], 128
        $region28: #{tpu_custom_call.1} parent=23 // pred_fallthru
          _
        %p99 = pneg %p32
        %p100 = pneg %p29
        %p101 = pneg %p58
        %p102 = pneg %p55
        %s103 = sand.u32 %s45, 1
        %s104 = scalar_lea.sflag [#allocation4], %s103
        %s105 = sand.u32 %s45, 1
        %s106 = smul.addr %s105, 8
        %s107 = scalar_lea.vmem [#allocation5], %s106
        %v108 = vld [vmem:[#allocation2] sm:$0xff]
        %109 = vst [vmem:[%s107] sm:$0xff] %v108
        %s110 = sand.u32 %s45, 1
        %s111 = scalar_lea.sflag [#allocation4], %s110
        %s112 = sand.u32 %s45, 1
        %s113 = smul.addr %s112, 8
        %s114 = scalar_lea.vmem [#allocation5], %s113
        // Predicated region
        $region29: #{tpu_custom_call.1} parent=23 // pred_check
          %p115 = pneg %p55
        $region30: #{tpu_custom_call.1} parent=23 // pred_check_branch
          %117 = sbr.rel (%p115) target = $region32
        $region31: #{tpu_custom_call.1} parent=23 // pred_region
          %s119 = ssub.s32 128, 128
          %120 = vsyncadd %s111, %s119
          %s121 = smul.addr %s16, 128
          %s122 = scalar_lea.hbm %s1, %s121
          %s124 = sshll.u32 %s114, 4
          %s125 = int_to_ptr.vmem [resolvable:$true] %s124
          %127 = dma.vmem_to_hbm [thread:$0]  %s125, 128, %s122, %s111
        $region32: #{tpu_custom_call.1} parent=23 // pred_fallthru
          _
      $region24: #{tpu_custom_call.1} parent=5 // pred_fallthru
        _
      %p128 = scmp.le.s32.totalorder 2, %s11
      // Predicated region
      $region33: #{tpu_custom_call.1} parent=5 // pred_check
        %p129 = pneg %p128
      $region34: #{tpu_custom_call.1} parent=5 // pred_check_branch
        %131 = sbr.rel (%p129) target = $region36
      $region35: #{tpu_custom_call.1} parent=5 // pred_region
        %s132 = ssub.s32 %s11, 2
        // Predicated region
        $region37: #{tpu_custom_call.1} parent=35 // pred_check
          %p133 = pneg %p61
        $region38: #{tpu_custom_call.1} parent=35 // pred_check_branch
          %135 = sbr.rel (%p133) target = $region40
        $region39: #{tpu_custom_call.1} parent=35 // pred_region
          %s136 = sand.u32 %s46, 1
          %s137 = scalar_lea.sflag [#allocation4], %s136
          %s138 = sand.u32 %s46, 1
          %s139 = smul.addr %s138, 8
          %s140 = scalar_lea.vmem [#allocation5], %s139
          %141 = dma.done %s137, 128
        $region40: #{tpu_custom_call.1} parent=35 // pred_fallthru
          _
      $region36: #{tpu_custom_call.1} parent=5 // pred_fallthru
        _
    $region6: #{tpu_custom_call.1} parent=1 // loop_footer
      %s15 = sadd.s32 1, %s11
    $region7: #{tpu_custom_call.1} parent=1 // loop_footer_branch
      %10 = sbr.rel target = $region3
    $region8: #{tpu_custom_call.1} parent=1 // loop_exit
      _
    %142 = vsyncpa [#allocation3], 1
    %s143 = scalar_lea.sflag [#allocation3], 1
    %144 = vsyncpa %s143, 1
    %145 = vsyncpa [#allocation4], 1
    %s146 = scalar_lea.sflag [#allocation4], 1
    %147 = vsyncpa %s146, 1

// kernel: tpu_custom_call.1
$region0: #{tpu_custom_call.1}
  #allocation0 [shape = 'u32[]', space=smem, size = 0x4, offset = 0x4, fixed_abs, tag = 'smem constant byte address 0x4 - core index']
  #allocation1 [shape = 'u32[144,128]{1,0:T(1,128)}', space=vmem, size = 0x12000, scoped, tag = 'internal scratch']
  %s0 = inlined_call_operand.vmem [shape: f32[64,48], index: 0, kind: input, shape index: {}]
  %s1 = inlined_call_operand.vmem [shape: f32[48,128], index: 1, kind: input, shape index: {}]
  %s2 = inlined_call_operand.vmem [shape: f32[1,128], index: 2, kind: input, shape index: {}]
  %s3 = inlined_call_operand.vmem [shape: f32[128,40], index: 3, kind: input, shape index: {}]
  %s4 = inlined_call_operand.vmem [shape: f32[1,40], index: 4, kind: input, shape index: {}]
  %s5 = inlined_call_operand.vmem [shape: f32[64,40], index: 5, kind: output, shape index: {}]
  %s6 = sld [smem:[#allocation0]]
  $region30: #{tpu_custom_call.1} parent=0
    _
  %s8 = ssub.s32 1, %s6
  %s9 = scalar_select 0, %s8, %s6
  // Predicated region
  $region2: #{tpu_custom_call.1} parent=0 // pred_check
    _
  $region3: #{tpu_custom_call.1} parent=0 // pred_check_branch
    %11 = sbr.rel (0) target = $region5
  $region4: #{tpu_custom_call.1} parent=0 // pred_region
    _
  $region5: #{tpu_custom_call.1} parent=0 // pred_fallthru
    _
  // Predicated region
  $region6: #{tpu_custom_call.1} parent=0 // pred_check
    _
  $region7: #{tpu_custom_call.1} parent=0 // pred_check_branch
    %13 = sbr.rel (0) target = $region9
  $region8: #{tpu_custom_call.1} parent=0 // pred_region
    _
  $region9: #{tpu_custom_call.1} parent=0 // pred_fallthru
    _
  // Predicated region
  $region10: #{tpu_custom_call.1} parent=0 // pred_check
    _
  $region11: #{tpu_custom_call.1} parent=0 // pred_check_branch
    %15 = sbr.rel (0) target = $region13
  $region12: #{tpu_custom_call.1} parent=0 // pred_region
    _
  $region13: #{tpu_custom_call.1} parent=0 // pred_fallthru
    _
  // Predicated region
  $region14: #{tpu_custom_call.1} parent=0 // pred_check
    _
  $region15: #{tpu_custom_call.1} parent=0 // pred_check_branch
    %17 = sbr.rel (0) target = $region17
  $region16: #{tpu_custom_call.1} parent=0 // pred_region
    _
  $region17: #{tpu_custom_call.1} parent=0 // pred_fallthru
    _
  // Predicated region
  $region18: #{tpu_custom_call.1} parent=0 // pred_check
    _
  $region19: #{tpu_custom_call.1} parent=0 // pred_check_branch
    %19 = sbr.rel (0) target = $region21
  $region20: #{tpu_custom_call.1} parent=0 // pred_region
    _
  $region21: #{tpu_custom_call.1} parent=0 // pred_fallthru
    _
  %v20 = vld [vmem:[%s0] sm:$0xff]
  %v21 = vld [vmem:[%s0 + $0x8] sm:$0xff]
  %v22 = vld [vmem:[%s0 + $0x10] sm:$0xff]
  %v23 = vld [vmem:[%s0 + $0x18] sm:$0xff]
  %v24 = vld [vmem:[%s0 + $0x20] sm:$0xff]
  %v25 = vld [vmem:[%s0 + $0x28] sm:$0xff]
  %v26 = vld [vmem:[%s0 + $0x30] sm:$0xff]
  %v27 = vld [vmem:[%s0 + $0x38] sm:$0xff]
  %v28 = vld [vmem:[%s1] sm:$0xff]
  %v29 = vld [vmem:[%s1 + $0x8] sm:$0xff]
  %v30 = vld [vmem:[%s1 + $0x10] sm:$0xff]
  %v31 = vld [vmem:[%s1 + $0x18] sm:$0xff]
  %v32 = vld [vmem:[%s1 + $0x20] sm:$0xff]
  %v33 = vld [vmem:[%s1 + $0x28] sm:$0xff]
  %v34 = vld [vmem:[%s2] sm:$0x1]
  %v36 = vlaneseq
  %v37 = vshrl.u32 %v36, 7
  %v38 = vsub.s32 0, %v37
  %v39 = vrot.slane %v34, %v38
  %vm41 = vcmask 392192
  %v43 = vsel %vm41, %v20, 0
  %v46 = vsel %vm41, %v21, 0
  %v49 = vsel %vm41, %v22, 0
  %v52 = vsel %vm41, %v23, 0
  %v55 = vsel %vm41, %v24, 0
  %v58 = vsel %vm41, %v25, 0
  %v61 = vsel %vm41, %v26, 0
  %v64 = vsel %vm41, %v27, 0
  %66 = vmatprep.subr.mxu0 0.0
  %67 = vmatpush1.msra.mxu0 0.0
  %68 = vmatprep.subr.mxu0 0.0
  %69 = vmatpush1.msra.mxu0 0.0
  %70 = vmatprep.subr.mxu0 0.0
  %71 = vmatpush1.msra.mxu0 0.0
  %72 = vmatprep.subr.mxu0 0.0
  %73 = vmatpush1.msra.mxu0 0.0
  %74 = vmatprep.subr.mxu0 0.0
  %75 = vmatpush1.msra.mxu0 0.0
  %76 = vmatprep.subr.mxu0 0.0
  %77 = vmatpush1.msra.mxu0 0.0
  %78 = vmatprep.subr.mxu0 0.0
  %79 = vmatpush1.msra.mxu0 0.0
  %80 = vmatprep.subr.mxu0 0.0
  %81 = vmatpush1.msra.mxu0 0.0
  %82 = vmatprep.subr.mxu0 0.0
  %83 = vmatpush1.msra.mxu0 0.0
  %84 = vmatprep.subr.mxu0 0.0
  %85 = vmatpush1.msra.mxu0 0.0
  %86 = vmatprep.subr.mxu0 0.0
  %87 = vmatpush1.msra.mxu0 %v33
  %88 = vmatprep.subr.mxu0 0.0
  %89 = vmatpush1.msra.mxu0 %v32
  %90 = vmatprep.subr.mxu0 0.0
  %91 = vmatpush1.msra.mxu0 %v31
  %92 = vmatprep.subr.mxu0 0.0
  %93 = vmatpush1.msra.mxu0 %v30
  %94 = vmatprep.subr.mxu0 0.0
  %95 = vmatpush1.msra.mxu0 %v29
  %96 = vmatprep.subr.mxu0 0.0
  %97 = vmatpush1.msra.mxu0 %v28
  %98 = vmatprep.subr.mxu0 0.0
  %99 = vmatpush2.msra.mxu0 0.0
  %100 = vmatprep.subr.mxu0 0.0
  %101 = vmatpush2.msra.mxu0 0.0
  %102 = vmatprep.subr.mxu0 0.0
  %103 = vmatpush2.msra.mxu0 0.0
  %104 = vmatprep.subr.mxu0 0.0
  %105 = vmatpush2.msra.mxu0 0.0
  %106 = vmatprep.subr.mxu0 0.0
  %107 = vmatpush2.msra.mxu0 0.0
  %108 = vmatprep.subr.mxu0 0.0
  %109 = vmatpush2.msra.mxu0 0.0
  %110 = vmatprep.subr.mxu0 0.0
  %111 = vmatpush2.msra.mxu0 0.0
  %112 = vmatprep.subr.mxu0 0.0
  %113 = vmatpush2.msra.mxu0 0.0
  %114 = vmatprep.subr.mxu0 0.0
  %115 = vmatpush2.msra.mxu0 0.0
  %116 = vmatprep.subr.mxu0 0.0
  %117 = vmatpush2.msra.mxu0 0.0
  %118 = vmatprep.subr.mxu0 0.0
  %119 = vmatpush2.msra.mxu0 0.0
  %120 = vmatprep.subr.mxu0 0.0
  %121 = vmatpush2.msra.mxu0 0.0
  %122 = vmatprep.subr.mxu0 0.0
  %123 = vmatpush2.msra.mxu0 0.0
  %124 = vmatprep.subr.mxu0 0.0
  %125 = vmatpush2.msra.mxu0 0.0
  %126 = vmatprep.subr.mxu0 0.0
  %127 = vmatpush2.msra.mxu0 0.0
  %128 = vmatprep.subr.mxu0 0.0
  %129 = vmatpush2.msra.mxu0 0.0
  %130 = vmatprep.mubr.f32.mxu0 0.0
  %131 = vmatmul.mubr.f32.gmra.mxu0 %v43
  %v132 = vpop.f32.mrf.mxu0
  %v133 = vadd.f32 %v39, %v132
  %v134 = vpop.f32.mrf.mxu0
  %135 = vmatprep.mubr.f32.mxu0 0.0
  %136 = vmatmul.mubr.f32.gmra.mxu0 %v46
  %v137 = vpop.f32.mrf.mxu0
  %v138 = vadd.f32 %v39, %v137
  %v139 = vpop.f32.mrf.mxu0
  %140 = vmatprep.mubr.f32.mxu0 0.0
  %141 = vmatmul.mubr.f32.gmra.mxu0 %v49
  %v142 = vpop.f32.mrf.mxu0
  %v143 = vadd.f32 %v39, %v142
  %v144 = vpop.f32.mrf.mxu0
  %145 = vmatprep.mubr.f32.mxu0 0.0
  %146 = vmatmul.mubr.f32.gmra.mxu0 %v52
  %v147 = vpop.f32.mrf.mxu0
  %v148 = vadd.f32 %v39, %v147
  %v149 = vpop.f32.mrf.mxu0
  %150 = vmatprep.mubr.f32.mxu0 0.0
  %151 = vmatmul.mubr.f32.gmra.mxu0 %v55
  %v152 = vpop.f32.mrf.mxu0
  %v153 = vadd.f32 %v39, %v152
  %v154 = vpop.f32.mrf.mxu0
  %155 = vmatprep.mubr.f32.mxu0 0.0
  %156 = vmatmul.mubr.f32.gmra.mxu0 %v58
  %v157 = vpop.f32.mrf.mxu0
  %v158 = vadd.f32 %v39, %v157
  %v159 = vpop.f32.mrf.mxu0
  %160 = vmatprep.mubr.f32.mxu0 0.0
  %161 = vmatmul.mubr.f32.gmra.mxu0 %v61
  %v162 = vpop.f32.mrf.mxu0
  %v163 = vadd.f32 %v39, %v162
  %v164 = vpop.f32.mrf.mxu0
  %165 = vmatprep.mubr.f32.mxu0 0.0
  %166 = vmatmul.mubr.f32.gmra.mxu0 %v64
  %v167 = vpop.f32.mrf.mxu0
  %v168 = vadd.f32 %v39, %v167
  %v169 = vpop.f32.mrf.mxu0
  %170 = vdwg.mxu0
  %vm171 = vcmp.gt.f32.partialorder %v133, 0.0
  %vm172 = vcmp.gt.f32.partialorder %v138, 0.0
  %vm173 = vcmp.gt.f32.partialorder %v143, 0.0
  %vm174 = vcmp.gt.f32.partialorder %v148, 0.0
  %vm175 = vcmp.gt.f32.partialorder %v153, 0.0
  %vm176 = vcmp.gt.f32.partialorder %v158, 0.0
  %vm177 = vcmp.gt.f32.partialorder %v163, 0.0
  %vm178 = vcmp.gt.f32.partialorder %v168, 0.0
  %v179 = vmul.f32 %v133, 0.01
  %v180 = vmul.f32 %v138, 0.01
  %v181 = vmul.f32 %v143, 0.01
  %v182 = vmul.f32 %v148, 0.01
  %v183 = vmul.f32 %v153, 0.01
  %v184 = vmul.f32 %v158, 0.01
  %v185 = vmul.f32 %v163, 0.01
  %v186 = vmul.f32 %v168, 0.01
  %v187 = vsel %vm171, %v133, %v179
  %v188 = vsel %vm172, %v138, %v180
  %v189 = vsel %vm173, %v143, %v181
  %v190 = vsel %vm174, %v148, %v182
  %v191 = vsel %vm175, %v153, %v183
  %v192 = vsel %vm176, %v158, %v184
  %v193 = vsel %vm177, %v163, %v185
  %v194 = vsel %vm178, %v168, %v186
  %v195 = vld [vmem:[%s3] sm:$0xff]
  %v196 = vld [vmem:[%s3 + $0x8] sm:$0xff]
  %v197 = vld [vmem:[%s3 + $0x10] sm:$0xff]
  %v198 = vld [vmem:[%s3 + $0x18] sm:$0xff]
  %v199 = vld [vmem:[%s3 + $0x20] sm:$0xff]
  %v200 = vld [vmem:[%s3 + $0x28] sm:$0xff]
  %v201 = vld [vmem:[%s3 + $0x30] sm:$0xff]
  %v202 = vld [vmem:[%s3 + $0x38] sm:$0xff]
  %v203 = vld [vmem:[%s3 + $0x40] sm:$0xff]
  %v204 = vld [vmem:[%s3 + $0x48] sm:$0xff]
  %v205 = vld [vmem:[%s3 + $0x50] sm:$0xff]
  %v206 = vld [vmem:[%s3 + $0x58] sm:$0xff]
  %v207 = vld [vmem:[%s3 + $0x60] sm:$0xff]
  %v208 = vld [vmem:[%s3 + $0x68] sm:$0xff]
  %v209 = vld [vmem:[%s3 + $0x70] sm:$0xff]
  %v210 = vld [vmem:[%s3 + $0x78] sm:$0xff]
  %v211 = vld [vmem:[%s4] sm:$0x1]
  %v213 = vlaneseq
  %v214 = vshrl.u32 %v213, 7
  %v215 = vsub.s32 0, %v214
  %v216 = vrot.slane %v211, %v215
  %218 = vmatprep.subr.mxu0 0.0
  %219 = vmatpush1.msra.mxu0 %v210
  %220 = vmatprep.subr.mxu0 0.0
  %221 = vmatpush1.msra.mxu0 %v209
  %222 = vmatprep.subr.mxu0 0.0
  %223 = vmatpush1.msra.mxu0 %v208
  %224 = vmatprep.subr.mxu0 0.0
  %225 = vmatpush1.msra.mxu0 %v207
  %226 = vmatprep.subr.mxu0 0.0
  %227 = vmatpush1.msra.mxu0 %v206
  %228 = vmatprep.subr.mxu0 0.0
  %229 = vmatpush1.msra.mxu0 %v205
  %230 = vmatprep.subr.mxu0 0.0
  %231 = vmatpush1.msra.mxu0 %v204
  %232 = vmatprep.subr.mxu0 0.0
  %233 = vmatpush1.msra.mxu0 %v203
  %234 = vmatprep.subr.mxu0 0.0
  %235 = vmatpush1.msra.mxu0 %v202
  %236 = vmatprep.subr.mxu0 0.0
  %237 = vmatpush1.msra.mxu0 %v201
  %238 = vmatprep.subr.mxu0 0.0
  %239 = vmatpush1.msra.mxu0 %v200
  %240 = vmatprep.subr.mxu0 0.0
  %241 = vmatpush1.msra.mxu0 %v199
  %242 = vmatprep.subr.mxu0 0.0
  %243 = vmatpush1.msra.mxu0 %v198
  %244 = vmatprep.subr.mxu0 0.0
  %245 = vmatpush1.msra.mxu0 %v197
  %246 = vmatprep.subr.mxu0 0.0
  %247 = vmatpush1.msra.mxu0 %v196
  %248 = vmatprep.subr.mxu0 0.0
  %249 = vmatpush1.msra.mxu0 %v195
  %250 = vmatprep.subr.mxu0 0.0
  %251 = vmatpush2.msra.mxu0 0.0
  %252 = vmatprep.subr.mxu0 0.0
  %253 = vmatpush2.msra.mxu0 0.0
  %254 = vmatprep.subr.mxu0 0.0
  %255 = vmatpush2.msra.mxu0 0.0
  %256 = vmatprep.subr.mxu0 0.0
  %257 = vmatpush2.msra.mxu0 0.0
  %258 = vmatprep.subr.mxu0 0.0
  %259 = vmatpush2.msra.mxu0 0.0
  %260 = vmatprep.subr.mxu0 0.0
  %261 = vmatpush2.msra.mxu0 0.0
  %262 = vmatprep.subr.mxu0 0.0
  %263 = vmatpush2.msra.mxu0 0.0
  %264 = vmatprep.subr.mxu0 0.0
  %265 = vmatpush2.msra.mxu0 0.0
  %266 = vmatprep.subr.mxu0 0.0
  %267 = vmatpush2.msra.mxu0 0.0
  %268 = vmatprep.subr.mxu0 0.0
  %269 = vmatpush2.msra.mxu0 0.0
  %270 = vmatprep.subr.mxu0 0.0
  %271 = vmatpush2.msra.mxu0 0.0
  %272 = vmatprep.subr.mxu0 0.0
  %273 = vmatpush2.msra.mxu0 0.0
  %274 = vmatprep.subr.mxu0 0.0
  %275 = vmatpush2.msra.mxu0 0.0
  %276 = vmatprep.subr.mxu0 0.0
  %277 = vmatpush2.msra.mxu0 0.0
  %278 = vmatprep.subr.mxu0 0.0
  %279 = vmatpush2.msra.mxu0 0.0
  %280 = vmatprep.subr.mxu0 0.0
  %281 = vmatpush2.msra.mxu0 0.0
  %282 = vmatprep.mubr.f32.mxu0 0.0
  %283 = vmatmul.mubr.f32.gmra.mxu0 %v187
  %v284 = vpop.f32.mrf.mxu0
  %v285 = vadd.f32 %v216, %v284
  %v286 = vpop.f32.mrf.mxu0
  %287 = vmatprep.mubr.f32.mxu0 0.0
  %288 = vmatmul.mubr.f32.gmra.mxu0 %v188
  %v289 = vpop.f32.mrf.mxu0
  %v290 = vadd.f32 %v216, %v289
  %v291 = vpop.f32.mrf.mxu0
  %292 = vmatprep.mubr.f32.mxu0 0.0
  %293 = vmatmul.mubr.f32.gmra.mxu0 %v189
  %v294 = vpop.f32.mrf.mxu0
  %v295 = vadd.f32 %v216, %v294
  %v296 = vpop.f32.mrf.mxu0
  %297 = vmatprep.mubr.f32.mxu0 0.0
  %298 = vmatmul.mubr.f32.gmra.mxu0 %v190
  %v299 = vpop.f32.mrf.mxu0
  %v300 = vadd.f32 %v216, %v299
  %v301 = vpop.f32.mrf.mxu0
  %302 = vmatprep.mubr.f32.mxu0 0.0
  %303 = vmatmul.mubr.f32.gmra.mxu0 %v191
  %v304 = vpop.f32.mrf.mxu0
  %v305 = vadd.f32 %v216, %v304
  %v306 = vpop.f32.mrf.mxu0
  %307 = vmatprep.mubr.f32.mxu0 0.0
  %308 = vmatmul.mubr.f32.gmra.mxu0 %v192
  %v309 = vpop.f32.mrf.mxu0
  %v310 = vadd.f32 %v216, %v309
  %v311 = vpop.f32.mrf.mxu0
  %312 = vmatprep.mubr.f32.mxu0 0.0
  %313 = vmatmul.mubr.f32.gmra.mxu0 %v193
  %v314 = vpop.f32.mrf.mxu0
  %v315 = vadd.f32 %v216, %v314
  %v316 = vpop.f32.mrf.mxu0
  %317 = vmatprep.mubr.f32.mxu0 0.0
  %318 = vmatmul.mubr.f32.gmra.mxu0 %v194
  %v319 = vpop.f32.mrf.mxu0
  %v320 = vadd.f32 %v216, %v319
  %v321 = vpop.f32.mrf.mxu0
  %322 = vdwg.mxu0
  %vm323 = vcmp.gt.f32.partialorder %v285, 0.0
  %vm324 = vcmp.gt.f32.partialorder %v290, 0.0
  %vm325 = vcmp.gt.f32.partialorder %v295, 0.0
  %vm326 = vcmp.gt.f32.partialorder %v300, 0.0
  %vm327 = vcmp.gt.f32.partialorder %v305, 0.0
  %vm328 = vcmp.gt.f32.partialorder %v310, 0.0
  %vm329 = vcmp.gt.f32.partialorder %v315, 0.0
  %vm330 = vcmp.gt.f32.partialorder %v320, 0.0
  %v331 = vmul.f32 %v285, 0.01
  %v332 = vmul.f32 %v290, 0.01
  %v333 = vmul.f32 %v295, 0.01
  %v334 = vmul.f32 %v300, 0.01
  %v335 = vmul.f32 %v305, 0.01
  %v336 = vmul.f32 %v310, 0.01
  %v337 = vmul.f32 %v315, 0.01
  %v338 = vmul.f32 %v320, 0.01
  %v339 = vsel %vm323, %v285, %v331
  %v340 = vsel %vm324, %v290, %v332
  %v341 = vsel %vm325, %v295, %v333
  %v342 = vsel %vm326, %v300, %v334
  %v343 = vsel %vm327, %v305, %v335
  %v344 = vsel %vm328, %v310, %v336
  %v345 = vsel %vm329, %v315, %v337
  %v346 = vsel %vm330, %v320, %v338
  %vm347 = vcmask 326656
  %348 = vst.msk [vmem:[%s5] sm:$0xff] %vm347, %v339
  %349 = vst.msk [vmem:[%s5 + $0x8] sm:$0xff] %vm347, %v340
  %350 = vst.msk [vmem:[%s5 + $0x10] sm:$0xff] %vm347, %v341
  %351 = vst.msk [vmem:[%s5 + $0x18] sm:$0xff] %vm347, %v342
  %352 = vst.msk [vmem:[%s5 + $0x20] sm:$0xff] %vm347, %v343
  %353 = vst.msk [vmem:[%s5 + $0x28] sm:$0xff] %vm347, %v344
  %354 = vst.msk [vmem:[%s5 + $0x30] sm:$0xff] %vm347, %v345
  %355 = vst.msk [vmem:[%s5 + $0x38] sm:$0xff] %vm347, %v346
  // Predicated region
  $region22: #{tpu_custom_call.1} parent=0 // pred_check
    _
  $region23: #{tpu_custom_call.1} parent=0 // pred_check_branch
    %357 = sbr.rel (0) target = $region25
  $region24: #{tpu_custom_call.1} parent=0 // pred_region
    _
  $region25: #{tpu_custom_call.1} parent=0 // pred_fallthru
    _
  // Predicated region
  $region26: #{tpu_custom_call.1} parent=0 // pred_check
    _
  $region27: #{tpu_custom_call.1} parent=0 // pred_check_branch
    %359 = sbr.rel (0) target = $region29
  $region28: #{tpu_custom_call.1} parent=0 // pred_region
    _
  $region29: #{tpu_custom_call.1} parent=0 // pred_fallthru
    _

</llo_original>
